<compile_context>
chip_gen: v6e
topology: v6e:2x2x1
jax: 0.10.0
libtpu: 0.0.40
codegen_flags: <defaults>
</compile_context>

<pallas_src>
import functools

import jax
import jax.numpy as jnp
from jax.experimental import pallas as pl
from jax.experimental.pallas import tpu as pltpu


def _round_up(x, m):
    return ((x + m - 1) // m) * m


def _vmem_capacity_bytes():
    """Per-core VMEM capacity; conservative fallback if the query fails."""
    try:
        return int(pltpu.get_tpu_info().vmem_capacity_bytes)
    except Exception:          # pragma: no cover - interpret mode / old runtime
        return 64 << 20        # v7x per-TensorCore size: safe lower bound


def _facilitator_kernel(text_ref, protein_ref, w1_ref, b1_ref, w2_ref, b2_ref,
                        sse_ref, *, valid_rows, tile_rows, mask_last):
    """One (TM, Dp) batch tile: 2-layer MLP + partial sum of squared errors."""
    i = pl.program_id(0)

    # ---- MLP hot path (MXU, bf16 inputs, f32 accumulation) ----
    x = text_ref[...].astype(jnp.bfloat16)                    # in-kernel cast
    h = jnp.dot(x, w1_ref[...], preferred_element_type=jnp.float32)
    h = h + b1_ref[...]                                       # f32 bias
    h = h * jax.nn.sigmoid(h)                                 # SiLU (EUP, f32)
    # TODO(synk): on v6e/v7x a bf16 SiLU and a 2-way TM sub-chunk (matmul2 of
    # chunk0 overlapping matmul1 of chunk1 via unrolled fori_loop) shorten the
    # serialized EUP stretch for large D; omitted to keep v5e path/numerics
    # identical.
    pred = jnp.dot(h.astype(jnp.bfloat16), w2_ref[...],
                   preferred_element_type=jnp.float32)
    pred = pred + b2_ref[...]                                 # (TM, Dp) f32

    # ---- squared-error epilogue (f32) ----
    diff = protein_ref[...].astype(jnp.float32) - pred

    def _emit(d):
        # Broadcast the scalar partial over the whole (8,128) block so the
        # store is a full, unmasked lane-dense vst.
        sse_ref[...] = jnp.full(sse_ref.shape, jnp.sum(d * d), jnp.float32)

    if mask_last:
        last = pl.num_programs(0) - 1

        @pl.when(i == last)          # only the ragged tile pays the row mask
        def _():
            row = i * tile_rows + jax.lax.broadcasted_iota(
                jnp.int32, diff.shape, 0)
            _emit(jnp.where(row < valid_rows, diff, 0.0))

        @pl.when(i != last)
        def _():
            _emit(diff)
    else:
        _emit(diff)


def prepare_params(w1, b1, w2, b2):
    """One-time parameter prep: pad latent dim to a lane multiple and pre-cast
    weights to bf16 (MXU-native).  w1, w2 are (D_in, D_out) (nn.Linear weight
    transposed); b1, b2 are (D,)."""
    D = w1.shape[0]
    assert w1.shape == (D, D) and w2.shape == (D, D)
    assert b1.shape == (D,) and b2.shape == (D,)
    Dp = _round_up(D, 128)

    def pad_w(w):
        return jnp.pad(w.astype(jnp.bfloat16), ((0, Dp - D), (0, Dp - D)))

    def pad_b(b):
        return jnp.pad(b.astype(jnp.float32).reshape(1, D),
                       ((0, 0), (0, Dp - D)))

    return pad_w(w1), pad_b(b1), pad_w(w2), pad_b(b2)


def gaussian_facilitator_loss(protein_repr, text_repr, params):
    """Scalar MSE loss, matching GaussianFacilitatorModel.forward.

    `params` comes from prepare_params (padded bf16 weights, f32 biases).
    """
    w1_p, b1_p, w2_p, b2_p = params
    B, D = text_repr.shape
    assert protein_repr.shape == (B, D)
    Dp = w1_p.shape[0]
    assert Dp == _round_up(D, 128)

    # Only the feature axis ever needs wrapper-side padding.  Zero-padding is
    # exact: padded input columns hit zero weight rows; padded output columns
    # compare 0 vs 0.
    if Dp != D:
        text_repr = jnp.pad(text_repr, ((0, 0), (0, Dp - D)))
        protein_repr = jnp.pad(protein_repr, ((0, 0), (0, Dp - D)))

    text_bytes = jnp.dtype(text_repr.dtype).itemsize
    prot_bytes = jnp.dtype(protein_repr.dtype).itemsize

    # ---- generation-aware VMEM budgeting / tile-size selection ----
    vmem_cap = _vmem_capacity_bytes()
    weight_bytes = 2 * Dp * Dp * 2 + 2 * Dp * 4   # Buffered(1): one copy each
    # TODO(synk): if weight_bytes approaches vmem_cap (latent_dim beyond ~2.9k
    # on v7x's 64 MiB/core), switch to a K-tiled grid with an f32 VMEM
    # accumulator instead of fully resident weights.
    per_row = 2 * Dp * (text_bytes + prot_bytes) + 6 * Dp * 4  # 2-buf streams + f32 temps
    if B < 32:
        TM = B                                    # single tile == full batch dim
    else:
        avail = max(vmem_cap - (16 << 20) - weight_bytes, 16 * per_row)
        tm = max(16, min(1024, int(avail // per_row)))
        tm -= tm % 16
        # >= 2 grid steps so the "parallel" batch axis can shard over both
        # TensorCores on v7x megacore.
        TM = max(16, min(tm, _round_up(-(-B // 2), 16)))
    G = -(-B // TM)
    mask_last = (B % TM) != 0

    kernel = functools.partial(_facilitator_kernel, valid_rows=B,
                               tile_rows=TM, mask_last=mask_last)

    # Cost hint for the XLA scheduler.
    flops = 4 * B * Dp * Dp + 6 * B * Dp
    bytes_accessed = (B * Dp * (text_bytes + prot_bytes)
                      + weight_bytes
                      + G * 8 * 128 * 4)
    cost = pl.CostEstimate(flops=flops, transcendentals=B * Dp,
                           bytes_accessed=bytes_accessed)

    # VMEM budget: single-buffered weights + double-buffered streamed tiles +
    # f32 temporaries + output + slack; clamped to this generation's capacity.
    vmem_budget = (weight_bytes
                   + 2 * TM * Dp * (text_bytes + prot_bytes)
                   + 6 * TM * Dp * 4
                   + 2 * 8 * 128 * 4
                   + (4 << 20))
    vmem_limit = int(min(max(vmem_budget, 32 << 20), vmem_cap - (8 << 20)))

    resident = dict(pipeline_mode=pl.Buffered(1))  # constant index_map: 1 buffer
    grid_spec = pltpu.PrefetchScalarGridSpec(
        num_scalar_prefetch=0,
        grid=(G,),
        in_specs=[
            pl.BlockSpec((TM, Dp), lambda i: (i, 0)),              # text tile
            pl.BlockSpec((TM, Dp), lambda i: (i, 0)),              # protein tile
            pl.BlockSpec((Dp, Dp), lambda i: (0, 0), **resident),  # w1 resident
            pl.BlockSpec((1, Dp), lambda i: (0, 0), **resident),   # b1 resident
            pl.BlockSpec((Dp, Dp), lambda i: (0, 0), **resident),  # w2 resident
            pl.BlockSpec((1, Dp), lambda i: (0, 0), **resident),   # b2 resident
        ],
        out_specs=pl.BlockSpec((8, 128), lambda i: (i, 0)),        # per-tile SSE
    )
    # TODO(synk): on v5e sweep pl.Buffered(3) on the two streamed tiles if the
    # bundle dump shows exposed copy waits.

    partials = pl.pallas_call(
        kernel,
        out_shape=jax.ShapeDtypeStruct((G * 8, 128), jnp.float32),
        grid_spec=grid_spec,
        compiler_params=pltpu.CompilerParams(
            dimension_semantics=("parallel",),
            vmem_limit_bytes=vmem_limit),
        cost_estimate=cost,
    )(text_repr, protein_repr, w1_p, b1_p, w2_p, b2_p)

    # Each tile broadcast its scalar over its (8,128) block: one dense sum and
    # a rescale (no strided gather / extra launch).
    sse = jnp.sum(partials) * (1.0 / (8.0 * 128.0))
    # Note: f32 accumulation is fine at these sizes; for B*D >> 2^24 consider
    # per-tile scaling or a higher-precision final reduction.
    return sse / jnp.float32(B * D)


def init_params(key, latent_dim):
    """nn.Linear-style init (uniform +-1/sqrt(fan_in)); weights are (D_in, D_out)."""
    k1, k2, k3, k4 = jax.random.split(key, 4)
    bound = 1.0 / jnp.sqrt(jnp.float32(latent_dim))
    w1 = jax.random.uniform(k1, (latent_dim, latent_dim), jnp.float32, -bound, bound)
    b1 = jax.random.uniform(k2, (latent_dim,), jnp.float32, -bound, bound)
    w2 = jax.random.uniform(k3, (latent_dim, latent_dim), jnp.float32, -bound, bound)
    b2 = jax.random.uniform(k4, (latent_dim,), jnp.float32, -bound, bound)
    return w1, b1, w2, b2


def _reference(protein_repr, text_repr, w1, b1, w2, b2):
    """Pure-JAX reference mirroring the kernel's bf16-in / f32-accum numerics."""
    f32 = jnp.float32
    xb = text_repr.astype(jnp.bfloat16).astype(f32)
    w1b = w1.astype(jnp.bfloat16).astype(f32)
    w2b = w2.astype(jnp.bfloat16).astype(f32)
    h = jnp.dot(xb, w1b, precision=jax.lax.Precision.HIGHEST) + b1
    h = h * jax.nn.sigmoid(h)
    hb = h.astype(jnp.bfloat16).astype(f32)
    pred = jnp.dot(hb, w2b, precision=jax.lax.Precision.HIGHEST) + b2
    return jnp.mean((protein_repr - pred) ** 2)


if __name__ == "__main__":
    key = jax.random.PRNGKey(0)
    k_params, k_prot, k_text = jax.random.split(key, 3)
    loss_fn = jax.jit(gaussian_facilitator_loss)

    # Case 1: small toy config (D=32 padded to 128 lanes, single batch tile).
    B1, D1 = 24, 32
    p1 = init_params(k_params, D1)
    prep1 = prepare_params(*p1)
    prot1 = jax.random.normal(k_prot, (B1, D1), jnp.float32)
    text1 = jax.random.normal(k_text, (B1, D1), jnp.float32)
    loss1 = jax.block_until_ready(loss_fn(prot1, text1, prep1))
    ref1 = _reference(prot1, text1, *p1)
    assert jnp.allclose(loss1, ref1, rtol=2e-3, atol=1e-3), (loss1, ref1)

    # Case 2: multi-tile grid (G=2, ragged last tile -> in-kernel row masking).
    B2, D2 = 600, 128
    p2 = init_params(k_params, D2)
    prep2 = prepare_params(*p2)
    prot2 = jax.random.normal(k_prot, (B2, D2), jnp.float32)
    text2 = jax.random.normal(k_text, (B2, D2), jnp.float32)
    loss2 = jax.block_until_ready(loss_fn(prot2, text2, prep2))
    ref2 = _reference(prot2, text2, *p2)
    assert jnp.allclose(loss2, ref2, rtol=2e-3, atol=1e-3), (loss2, ref2)

    print("KERNEL_OK")
</pallas_src>

<mosaic_0001>
module attributes {stable_mosaic.version = 11 : i64} {
  func.func @_facilitator_kernel(%arg0: i32, %arg1: memref<24x128xf32, #tpu.memory_space<vmem>>, %arg2: memref<24x128xf32, #tpu.memory_space<vmem>>, %arg3: memref<128x128xbf16, #tpu.memory_space<vmem>>, %arg4: memref<1x128xf32, #tpu.memory_space<vmem>>, %arg5: memref<128x128xbf16, #tpu.memory_space<vmem>>, %arg6: memref<1x128xf32, #tpu.memory_space<vmem>>, %arg7: memref<8x128xf32, #tpu.memory_space<vmem>>) attributes {dimension_semantics = [#tpu.dimension_semantics<parallel>], iteration_bounds = array<i64: 1>, scalar_prefetch = 0 : i64, scratch_operands = 0 : i64, tpu.core_type = #tpu.core_type<tc>, window_params = [{transform_indices = @transform_0, window_bounds = array<i64: 24, 128>}, {transform_indices = @transform_1, window_bounds = array<i64: 24, 128>}, {pipeline_mode = #tpu.pipeline_mode<synchronous>, transform_indices = @transform_2, window_bounds = array<i64: 128, 128>}, {pipeline_mode = #tpu.pipeline_mode<synchronous>, transform_indices = @transform_3, window_bounds = array<i64: 1, 128>}, {pipeline_mode = #tpu.pipeline_mode<synchronous>, transform_indices = @transform_4, window_bounds = array<i64: 128, 128>}, {pipeline_mode = #tpu.pipeline_mode<synchronous>, transform_indices = @transform_5, window_bounds = array<i64: 1, 128>}, {transform_indices = @transform_6, window_bounds = array<i64: 8, 128>}]} {
    %c0 = arith.constant 0 : index
    %c0_0 = arith.constant 0 : index
    %0 = vector.load %arg1[%c0, %c0_0] : memref<24x128xf32, #tpu.memory_space<vmem>>, vector<24x128xf32>
    %1 = arith.truncf %0 : vector<24x128xf32> to vector<24x128xbf16>
    %c0_1 = arith.constant 0 : index
    %c0_2 = arith.constant 0 : index
    %2 = vector.load %arg3[%c0_1, %c0_2] : memref<128x128xbf16, #tpu.memory_space<vmem>>, vector<128x128xbf16>
    %cst = arith.constant dense<0.000000e+00> : vector<24x128xf32>
    %3 = tpu.matmul %1, %2, %cst {dimension_numbers = #tpu.dot_dimension_numbers<[1], [0], [0], [1], [0, 0, 1, 1], [], []>} : vector<24x128xbf16>, vector<128x128xbf16>, vector<24x128xf32> -> vector<24x128xf32>
    %c0_3 = arith.constant 0 : index
    %c0_4 = arith.constant 0 : index
    %4 = vector.load %arg4[%c0_3, %c0_4] : memref<1x128xf32, #tpu.memory_space<vmem>>, vector<1x128xf32>
    %5 = vector.broadcast %4 : vector<1x128xf32> to vector<24x128xf32>
    %6 = arith.addf %3, %5 : vector<24x128xf32>
    %7 = arith.negf %6 : vector<24x128xf32>
    %8 = math.exp %7 : vector<24x128xf32>
    %cst_5 = arith.constant 1.000000e+00 : f32
    %9 = vector.broadcast %cst_5 : f32 to vector<24x128xf32>
    %10 = arith.addf %9, %8 : vector<24x128xf32>
    %11 = arith.divf %9, %10 : vector<24x128xf32>
    %12 = arith.mulf %6, %11 : vector<24x128xf32>
    %13 = arith.truncf %12 : vector<24x128xf32> to vector<24x128xbf16>
    %c0_6 = arith.constant 0 : index
    %c0_7 = arith.constant 0 : index
    %14 = vector.load %arg5[%c0_6, %c0_7] : memref<128x128xbf16, #tpu.memory_space<vmem>>, vector<128x128xbf16>
    %cst_8 = arith.constant dense<0.000000e+00> : vector<24x128xf32>
    %15 = tpu.matmul %13, %14, %cst_8 {dimension_numbers = #tpu.dot_dimension_numbers<[1], [0], [0], [1], [0, 0, 1, 1], [], []>} : vector<24x128xbf16>, vector<128x128xbf16>, vector<24x128xf32> -> vector<24x128xf32>
    %c0_9 = arith.constant 0 : index
    %c0_10 = arith.constant 0 : index
    %16 = vector.load %arg6[%c0_9, %c0_10] : memref<1x128xf32, #tpu.memory_space<vmem>>, vector<1x128xf32>
    %17 = vector.broadcast %16 : vector<1x128xf32> to vector<24x128xf32>
    %18 = arith.addf %15, %17 : vector<24x128xf32>
    %c0_11 = arith.constant 0 : index
    %c0_12 = arith.constant 0 : index
    %19 = vector.load %arg2[%c0_11, %c0_12] : memref<24x128xf32, #tpu.memory_space<vmem>>, vector<24x128xf32>
    %20 = arith.subf %19, %18 : vector<24x128xf32>
    %21 = arith.mulf %20, %20 : vector<24x128xf32>
    %22 = vector.shape_cast %21 : vector<24x128xf32> to vector<1x24x128xf32>
    %cst_13 = arith.constant dense<0.000000e+00> : vector<1xf32>
    %23 = vector.multi_reduction <add>, %22, %cst_13 [1, 2] : vector<1x24x128xf32> to vector<1xf32>
    %24 = vector.shape_cast %23 : vector<1xf32> to vector<1x1x1xf32>
    %25 = vector.extract %24[0, 0, 0] : f32 from vector<1x1x1xf32>
    %26 = vector.broadcast %25 : f32 to vector<8x128xf32>
    %c0_14 = arith.constant 0 : index
    %c0_15 = arith.constant 0 : index
    %27 = vector.load %arg7[%c0_14, %c0_15] : memref<8x128xf32, #tpu.memory_space<vmem>>, vector<8x128xf32>
    tpu.vector_store %arg7[%c0_14, %c0_15], %26 {strides = array<i32>} : memref<8x128xf32, #tpu.memory_space<vmem>>, vector<8x128xf32>,
    return
  }
  func.func @transform_0(%arg0: i32) -> (i32, i32) {
    %c0_i32 = arith.constant 0 : i32
    %c0_i32_0 = arith.constant 0 : i32
    return %arg0, %c0_i32 : i32, i32
  }
  func.func @transform_1(%arg0: i32) -> (i32, i32) {
    %c0_i32 = arith.constant 0 : i32
    %c0_i32_0 = arith.constant 0 : i32
    return %arg0, %c0_i32 : i32, i32
  }
  func.func @transform_2(%arg0: i32) -> (i32, i32) {
    %c0_i32 = arith.constant 0 : i32
    %c0_i32_0 = arith.constant 0 : i32
    %c0_i32_1 = arith.constant 0 : i32
    return %c0_i32, %c0_i32_0 : i32, i32
  }
  func.func @transform_3(%arg0: i32) -> (i32, i32) {
    %c0_i32 = arith.constant 0 : i32
    %c0_i32_0 = arith.constant 0 : i32
    %c0_i32_1 = arith.constant 0 : i32
    return %c0_i32, %c0_i32_0 : i32, i32
  }
  func.func @transform_4(%arg0: i32) -> (i32, i32) {
    %c0_i32 = arith.constant 0 : i32
    %c0_i32_0 = arith.constant 0 : i32
    %c0_i32_1 = arith.constant 0 : i32
    return %c0_i32, %c0_i32_0 : i32, i32
  }
  func.func @transform_5(%arg0: i32) -> (i32, i32) {
    %c0_i32 = arith.constant 0 : i32
    %c0_i32_0 = arith.constant 0 : i32
    %c0_i32_1 = arith.constant 0 : i32
    return %c0_i32, %c0_i32_0 : i32, i32
  }
  func.func @transform_6(%arg0: i32) -> (i32, i32) {
    %c0_i32 = arith.constant 0 : i32
    %c0_i32_0 = arith.constant 0 : i32
    return %arg0, %c0_i32 : i32, i32
  }
}

</mosaic_0001>

<llo_original>
// kernel: gaussian_facilitator_loss.1
$region0: #{gaussian_facilitator_loss.1}
  #allocation0 [shape = 'u32[]', space=smem, size = 0x4, offset = 0x4, fixed_abs, tag = 'smem constant byte address 0x4 - core index']
  #allocation1 [shape = 'u32[144,128]{1,0:T(1,128)}', space=vmem, size = 0x12000, scoped, tag = 'internal scratch']
  %s0 = inlined_call_operand.vmem [shape: f32[24,128], index: 0, kind: input, shape index: {}]
  %s1 = inlined_call_operand.vmem [shape: f32[24,128], index: 1, kind: input, shape index: {}]
  %s2 = inlined_call_operand.vmem [shape: bf16[128,128], index: 2, kind: input, shape index: {}]
  %s3 = inlined_call_operand.vmem [shape: f32[1,128], index: 3, kind: input, shape index: {}]
  %s4 = inlined_call_operand.hbm [shape: bf16[128,128], index: 4, kind: input, shape index: {}]
  %s5 = inlined_call_operand.vmem [shape: f32[1,128], index: 5, kind: input, shape index: {}]
  %s6 = inlined_call_operand.vmem [shape: f32[8,128], index: 6, kind: output, shape index: {}]
  %s7 = sld [smem:[#allocation0]]
  $region38: #{gaussian_facilitator_loss.1} parent=0
    _
  %s9 = ssub.s32 1, %s7
  %s10 = scalar_select 0, %s9, %s7
  $region1: #{gaussian_facilitator_loss.1} parent=0
    #allocation2 [shape = 'u8[32768]{0}', space=vmem, size = 0x8000, scoped, tag = 'input window, operand 4, single buffered']
    #allocation3 [shape = 's32[1]{0}', space=sflag, size = 0x4, scoped, tag = 'scoped memory for gaussian_facilitator_loss.1']
    %11 = vsyncpa [#allocation3], 0
    // Predicated region
    $region2: #{gaussian_facilitator_loss.1} parent=1 // pred_check
      _
    $region3: #{gaussian_facilitator_loss.1} parent=1 // pred_check_branch
      %13 = sbr.rel (0) target = $region5
    $region4: #{gaussian_facilitator_loss.1} parent=1 // pred_region
      _
    $region5: #{gaussian_facilitator_loss.1} parent=1 // pred_fallthru
      _
    // Predicated region
    $region6: #{gaussian_facilitator_loss.1} parent=1 // pred_check
      _
    $region7: #{gaussian_facilitator_loss.1} parent=1 // pred_check_branch
      %15 = sbr.rel (0) target = $region9
    $region8: #{gaussian_facilitator_loss.1} parent=1 // pred_region
      _
    $region9: #{gaussian_facilitator_loss.1} parent=1 // pred_fallthru
      _
    // Predicated region
    $region10: #{gaussian_facilitator_loss.1} parent=1 // pred_check
      _
    $region11: #{gaussian_facilitator_loss.1} parent=1 // pred_check_branch
      %17 = sbr.rel (0) target = $region13
    $region12: #{gaussian_facilitator_loss.1} parent=1 // pred_region
      _
    $region13: #{gaussian_facilitator_loss.1} parent=1 // pred_fallthru
      _
    // Predicated region
    $region14: #{gaussian_facilitator_loss.1} parent=1 // pred_check
      _
    $region15: #{gaussian_facilitator_loss.1} parent=1 // pred_check_branch
      %19 = sbr.rel (0) target = $region17
    $region16: #{gaussian_facilitator_loss.1} parent=1 // pred_region
      _
    $region17: #{gaussian_facilitator_loss.1} parent=1 // pred_fallthru
      _
    // Predicated region
    $region18: #{gaussian_facilitator_loss.1} parent=1 // pred_check
      _
    $region19: #{gaussian_facilitator_loss.1} parent=1 // pred_check_branch
      %21 = sbr.rel (0) target = $region21
    $region20: #{gaussian_facilitator_loss.1} parent=1 // pred_region
      %s23 = ssub.s32 1024, 1024
      %24 = vsyncadd [#allocation3], %s23
      %s25 = sshll.u32 [#allocation2], 4
      %s26 = int_to_ptr.vmem [resolvable:$true] %s25
      %31 = dma.hbm_to_vmem [thread:$0]  %s4, 1024, %s26, [#allocation3], 64, 64, 4
    $region21: #{gaussian_facilitator_loss.1} parent=1 // pred_fallthru
      _
    // Predicated region
    $region22: #{gaussian_facilitator_loss.1} parent=1 // pred_check
      _
    $region23: #{gaussian_facilitator_loss.1} parent=1 // pred_check_branch
      %33 = sbr.rel (0) target = $region25
    $region24: #{gaussian_facilitator_loss.1} parent=1 // pred_region
      _
    $region25: #{gaussian_facilitator_loss.1} parent=1 // pred_fallthru
      _
    // Predicated region
    $region26: #{gaussian_facilitator_loss.1} parent=1 // pred_check
      _
    $region27: #{gaussian_facilitator_loss.1} parent=1 // pred_check_branch
      %35 = sbr.rel (0) target = $region29
    $region28: #{gaussian_facilitator_loss.1} parent=1 // pred_region
      %36 = dma.done [#allocation3], 1024
    $region29: #{gaussian_facilitator_loss.1} parent=1 // pred_fallthru
      _
    %v38 = vld [vmem:[%s0] sm:$0xff]
    %v39 = vld [vmem:[%s0 + $0x8] sm:$0xff]
    %v40 = vld [vmem:[%s0 + $0x10] sm:$0xff]
    %v41 = vpack.c.bf16 %v39, %v38
    %v42 = vpack.c.bf16 %v40, %v40
    %v43 = vld [vmem:[%s2] sm:$0xf]
    %v44 = vld [vmem:[%s2 + $0x4] sm:$0xf]
    %v45 = vld [vmem:[%s2 + $0x8] sm:$0xf]
    %v46 = vld [vmem:[%s2 + $0xc] sm:$0xf]
    %v47 = vld [vmem:[%s2 + $0x10] sm:$0xf]
    %v48 = vld [vmem:[%s2 + $0x14] sm:$0xf]
    %v49 = vld [vmem:[%s2 + $0x18] sm:$0xf]
    %v50 = vld [vmem:[%s2 + $0x1c] sm:$0xf]
    %v51 = vld [vmem:[%s2 + $0x20] sm:$0xf]
    %v52 = vld [vmem:[%s2 + $0x24] sm:$0xf]
    %v53 = vld [vmem:[%s2 + $0x28] sm:$0xf]
    %v54 = vld [vmem:[%s2 + $0x2c] sm:$0xf]
    %v55 = vld [vmem:[%s2 + $0x30] sm:$0xf]
    %v56 = vld [vmem:[%s2 + $0x34] sm:$0xf]
    %v57 = vld [vmem:[%s2 + $0x38] sm:$0xf]
    %v58 = vld [vmem:[%s2 + $0x3c] sm:$0xf]
    %v59 = vld [vmem:[%s3] sm:$0x1]
    %v61 = vlaneseq
    %v62 = vshrl.u32 %v61, 7
    %v63 = vsub.s32 0, %v62
    %v64 = vrot.slane %v59, %v63
    %v82 = vunpack.c.l.b16 %v43
    %v83 = vunpack.c.l.b16 %v44
    %v84 = vunpack.c.l.b16 %v45
    %v85 = vunpack.c.l.b16 %v46
    %v86 = vunpack.c.l.b16 %v47
    %v87 = vunpack.c.l.b16 %v48
    %v88 = vunpack.c.l.b16 %v49
    %v89 = vunpack.c.l.b16 %v50
    %v90 = vunpack.c.l.b16 %v51
    %v91 = vunpack.c.l.b16 %v52
    %v92 = vunpack.c.l.b16 %v53
    %v93 = vunpack.c.l.b16 %v54
    %v94 = vunpack.c.l.b16 %v55
    %v95 = vunpack.c.l.b16 %v56
    %v96 = vunpack.c.l.b16 %v57
    %v97 = vunpack.c.l.b16 %v58
    %v98 = vpack.c.b16 %v83, %v82
    %v99 = vpack.c.b16 %v85, %v84
    %v100 = vpack.c.b16 %v87, %v86
    %v101 = vpack.c.b16 %v89, %v88
    %v102 = vpack.c.b16 %v91, %v90
    %v103 = vpack.c.b16 %v93, %v92
    %v104 = vpack.c.b16 %v95, %v94
    %v105 = vpack.c.b16 %v97, %v96
    %114 = vmatprep.subr.bf16.mxu0 0
    %115 = vmatpush1.bf16.msra.mxu0 %v105
    %116 = vmatprep.subr.bf16.mxu0 0
    %117 = vmatpush1.bf16.msra.mxu0 %v104
    %118 = vmatprep.subr.bf16.mxu0 0
    %119 = vmatpush1.bf16.msra.mxu0 %v103
    %120 = vmatprep.subr.bf16.mxu0 0
    %121 = vmatpush1.bf16.msra.mxu0 %v102
    %122 = vmatprep.subr.bf16.mxu0 0
    %123 = vmatpush1.bf16.msra.mxu0 %v101
    %124 = vmatprep.subr.bf16.mxu0 0
    %125 = vmatpush1.bf16.msra.mxu0 %v100
    %126 = vmatprep.subr.bf16.mxu0 0
    %127 = vmatpush1.bf16.msra.mxu0 %v99
    %128 = vmatprep.subr.bf16.mxu0 0
    %129 = vmatpush1.bf16.msra.mxu0 %v98
    %130 = vmatprep.subr.bf16.mxu0 0
    %131 = vmatpush2.bf16.msra.mxu0 0
    %132 = vmatprep.subr.bf16.mxu0 0
    %133 = vmatpush2.bf16.msra.mxu0 0
    %134 = vmatprep.subr.bf16.mxu0 0
    %135 = vmatpush2.bf16.msra.mxu0 0
    %136 = vmatprep.subr.bf16.mxu0 0
    %137 = vmatpush2.bf16.msra.mxu0 0
    %138 = vmatprep.subr.bf16.mxu0 0
    %139 = vmatpush2.bf16.msra.mxu0 0
    %140 = vmatprep.subr.bf16.mxu0 0
    %141 = vmatpush2.bf16.msra.mxu0 0
    %142 = vmatprep.subr.bf16.mxu0 0
    %143 = vmatpush2.bf16.msra.mxu0 0
    %144 = vmatprep.subr.bf16.mxu0 0
    %145 = vmatpush2.bf16.msra.mxu0 0
    %146 = vmatprep.mubr.bf16.mxu0 0
    %147 = vmatmul.mubr.bf16.gmra.mxu0 %v41
    %v148 = vpop.f32.mrf.mxu0
    %v149 = vadd.f32 %v64, %v148
    %v150 = vpop.f32.mrf.mxu0
    %v151 = vpop.f32.mrf.mxu0
    %v152 = vadd.f32 %v64, %v151
    %v153 = vpop.f32.mrf.mxu0
    %154 = vmatprep.mubr.bf16.mxu0 0
    %155 = vmatmul.mubr.bf16.gmra.mxu0 %v42
    %v156 = vpop.f32.mrf.mxu0
    %v157 = vadd.f32 %v64, %v156
    %v158 = vpop.f32.mrf.mxu0
    %v159 = vpop.f32.mrf.mxu0
    %v160 = vpop.f32.mrf.mxu0
    %161 = vdwg.mxu0
    %v162 = vxor.u32 %v149, 2147483648
    %v163 = vxor.u32 %v152, 2147483648
    %v164 = vxor.u32 %v157, 2147483648
    %v165 = vmul.f32 %v162, 1.442695
    %v166 = vpow.pop %v165
    %v167 = vmul.f32 %v163, 1.442695
    %v168 = vpow.pop %v167
    %v169 = vmul.f32 %v164, 1.442695
    %v170 = vpow.pop %v169
    %v171 = vadd.f32 %v166, 1.0
    %v172 = vadd.f32 %v168, 1.0
    %v173 = vadd.f32 %v170, 1.0
    %v174 = vrcp.pop %v171
    %v175 = vmul.f32 1.0, %v174
    %v176 = vrcp.pop %v172
    %v177 = vmul.f32 1.0, %v176
    %v178 = vrcp.pop %v173
    %v179 = vmul.f32 1.0, %v178
    %v180 = vmul.f32 %v149, %v175
    %v181 = vmul.f32 %v152, %v177
    %v182 = vmul.f32 %v157, %v179
    %v183 = vpack.c.bf16 %v181, %v180
    %v184 = vpack.c.bf16 %v182, %v182
    %v185 = vld [vmem:[#allocation2] sm:$0xf]
    %v186 = vld [vmem:[#allocation2 + $0x4] sm:$0xf]
    %v187 = vld [vmem:[#allocation2 + $0x8] sm:$0xf]
    %v188 = vld [vmem:[#allocation2 + $0xc] sm:$0xf]
    %v189 = vld [vmem:[#allocation2 + $0x10] sm:$0xf]
    %v190 = vld [vmem:[#allocation2 + $0x14] sm:$0xf]
    %v191 = vld [vmem:[#allocation2 + $0x18] sm:$0xf]
    %v192 = vld [vmem:[#allocation2 + $0x1c] sm:$0xf]
    %v193 = vld [vmem:[#allocation2 + $0x20] sm:$0xf]
    %v194 = vld [vmem:[#allocation2 + $0x24] sm:$0xf]
    %v195 = vld [vmem:[#allocation2 + $0x28] sm:$0xf]
    %v196 = vld [vmem:[#allocation2 + $0x2c] sm:$0xf]
    %v197 = vld [vmem:[#allocation2 + $0x30] sm:$0xf]
    %v198 = vld [vmem:[#allocation2 + $0x34] sm:$0xf]
    %v199 = vld [vmem:[#allocation2 + $0x38] sm:$0xf]
    %v200 = vld [vmem:[#allocation2 + $0x3c] sm:$0xf]
    %v201 = vld [vmem:[%s5] sm:$0x1]
    %v203 = vlaneseq
    %v204 = vshrl.u32 %v203, 7
    %v205 = vsub.s32 0, %v204
    %v206 = vrot.slane %v201, %v205
    %v224 = vunpack.c.l.b16 %v185
    %v225 = vunpack.c.l.b16 %v186
    %v226 = vunpack.c.l.b16 %v187
    %v227 = vunpack.c.l.b16 %v188
    %v228 = vunpack.c.l.b16 %v189
    %v229 = vunpack.c.l.b16 %v190
    %v230 = vunpack.c.l.b16 %v191
    %v231 = vunpack.c.l.b16 %v192
    %v232 = vunpack.c.l.b16 %v193
    %v233 = vunpack.c.l.b16 %v194
    %v234 = vunpack.c.l.b16 %v195
    %v235 = vunpack.c.l.b16 %v196
    %v236 = vunpack.c.l.b16 %v197
    %v237 = vunpack.c.l.b16 %v198
    %v238 = vunpack.c.l.b16 %v199
    %v239 = vunpack.c.l.b16 %v200
    %v240 = vpack.c.b16 %v225, %v224
    %v241 = vpack.c.b16 %v227, %v226
    %v242 = vpack.c.b16 %v229, %v228
    %v243 = vpack.c.b16 %v231, %v230
    %v244 = vpack.c.b16 %v233, %v232
    %v245 = vpack.c.b16 %v235, %v234
    %v246 = vpack.c.b16 %v237, %v236
    %v247 = vpack.c.b16 %v239, %v238
    %256 = vmatprep.subr.bf16.mxu0 0
    %257 = vmatpush1.bf16.msra.mxu0 %v247
    %258 = vmatprep.subr.bf16.mxu0 0
    %259 = vmatpush1.bf16.msra.mxu0 %v246
    %260 = vmatprep.subr.bf16.mxu0 0
    %261 = vmatpush1.bf16.msra.mxu0 %v245
    %262 = vmatprep.subr.bf16.mxu0 0
    %263 = vmatpush1.bf16.msra.mxu0 %v244
    %264 = vmatprep.subr.bf16.mxu0 0
    %265 = vmatpush1.bf16.msra.mxu0 %v243
    %266 = vmatprep.subr.bf16.mxu0 0
    %267 = vmatpush1.bf16.msra.mxu0 %v242
    %268 = vmatprep.subr.bf16.mxu0 0
    %269 = vmatpush1.bf16.msra.mxu0 %v241
    %270 = vmatprep.subr.bf16.mxu0 0
    %271 = vmatpush1.bf16.msra.mxu0 %v240
    %272 = vmatprep.subr.bf16.mxu0 0
    %273 = vmatpush2.bf16.msra.mxu0 0
    %274 = vmatprep.subr.bf16.mxu0 0
    %275 = vmatpush2.bf16.msra.mxu0 0
    %276 = vmatprep.subr.bf16.mxu0 0
    %277 = vmatpush2.bf16.msra.mxu0 0
    %278 = vmatprep.subr.bf16.mxu0 0
    %279 = vmatpush2.bf16.msra.mxu0 0
    %280 = vmatprep.subr.bf16.mxu0 0
    %281 = vmatpush2.bf16.msra.mxu0 0
    %282 = vmatprep.subr.bf16.mxu0 0
    %283 = vmatpush2.bf16.msra.mxu0 0
    %284 = vmatprep.subr.bf16.mxu0 0
    %285 = vmatpush2.bf16.msra.mxu0 0
    %286 = vmatprep.subr.bf16.mxu0 0
    %287 = vmatpush2.bf16.msra.mxu0 0
    %288 = vmatprep.mubr.bf16.mxu0 0
    %289 = vmatmul.mubr.bf16.gmra.mxu0 %v183
    %v290 = vpop.f32.mrf.mxu0
    %v291 = vadd.f32 %v206, %v290
    %v292 = vpop.f32.mrf.mxu0
    %v293 = vpop.f32.mrf.mxu0
    %v294 = vadd.f32 %v206, %v293
    %v295 = vpop.f32.mrf.mxu0
    %296 = vmatprep.mubr.bf16.mxu0 0
    %297 = vmatmul.mubr.bf16.gmra.mxu0 %v184
    %v298 = vpop.f32.mrf.mxu0
    %v299 = vadd.f32 %v206, %v298
    %v300 = vpop.f32.mrf.mxu0
    %v301 = vpop.f32.mrf.mxu0
    %v302 = vpop.f32.mrf.mxu0
    %303 = vdwg.mxu0
    %v304 = vld [vmem:[%s1] sm:$0xff]
    %v305 = vld [vmem:[%s1 + $0x8] sm:$0xff]
    %v306 = vld [vmem:[%s1 + $0x10] sm:$0xff]
    %v307 = vsub.f32 %v304, %v291
    %v308 = vsub.f32 %v305, %v294
    %v309 = vsub.f32 %v306, %v299
    %v310 = vmul.f32 %v307, %v307
    %v311 = vmul.f32 %v308, %v308
    %v312 = vmul.f32 %v309, %v309
    %v313 = vadd.f32 %v310, %v311
    %v314 = vadd.f32 %v313, %v312
    %315 = vadd.xlane.f32.xlu0 %v314
    %v316 = vpop.xlane.xlu0 %315
    %v317 = vrot.slane %v316, 4
    %v318 = vadd.f32 %v316, %v317
    %v319 = vrot.slane %v318, 2
    %v320 = vadd.f32 %v318, %v319
    %v321 = vrot.slane %v320, 1
    %v322 = vadd.f32 %v320, %v321
    %s323 = vtos %v322
    %v324 = vstv %s323
    %325 = vst [vmem:[%s6] sm:$0xff] %v324
    // Predicated region
    $region30: #{gaussian_facilitator_loss.1} parent=1 // pred_check
      _
    $region31: #{gaussian_facilitator_loss.1} parent=1 // pred_check_branch
      %327 = sbr.rel (0) target = $region33
    $region32: #{gaussian_facilitator_loss.1} parent=1 // pred_region
      _
    $region33: #{gaussian_facilitator_loss.1} parent=1 // pred_fallthru
      _
    // Predicated region
    $region34: #{gaussian_facilitator_loss.1} parent=1 // pred_check
      _
    $region35: #{gaussian_facilitator_loss.1} parent=1 // pred_check_branch
      %329 = sbr.rel (0) target = $region37
    $region36: #{gaussian_facilitator_loss.1} parent=1 // pred_region
      _
    $region37: #{gaussian_facilitator_loss.1} parent=1 // pred_fallthru
      _
    %330 = vsyncpa [#allocation3], 1

</llo_original>
